<compile_context>
chip_gen: v7x
topology: tpu7x:2x2x1
jax: 0.10.0
libtpu: 0.0.40
codegen_flags: <defaults>
</compile_context>

<pallas_src>
import functools

import jax
import jax.numpy as jnp
from jax.experimental import pallas as pl
from jax.experimental.pallas import tpu as pltpu


def _cdiv(a, b):
    return -(-a // b)


def _round_up(x, m):
    return _cdiv(x, m) * m


def _vmem_capacity_bytes():
    try:
        return int(pltpu.get_tpu_info().vmem_capacity_bytes)
    except Exception:
        return 64 << 20  # conservative (v7x per-TC VMEM)


def _fit_tile(dim, tile_max, granule):
    """Pick a tile <= tile_max (multiple of `granule`) that keeps padding small.

    For dims that fit in one tile this is just round_up(dim, granule).  For
    larger dims we try a few balanced block counts and keep the one with the
    least padding (ties -> larger tile).
    """
    dim = max(int(dim), 1)
    if dim <= tile_max:
        return _round_up(dim, granule)
    nb0 = _cdiv(dim, tile_max)
    best_key, best_tile = None, tile_max
    for nb in range(nb0, nb0 + 4):
        t = min(_round_up(_cdiv(dim, nb), granule), tile_max)
        pad = _round_up(dim, t) - dim
        key = (pad, -t)
        if best_key is None or key < best_key:
            best_key, best_tile = key, t
    return best_tile


def _select_tiles(M, N, K, dtype):
    """Dtype- and generation-aware tile selection with minimal padding."""
    isz = jnp.dtype(dtype).itemsize
    # Sublane packing: 8 rows for 4-byte, 16 for 2-byte, 32 for 1-byte dtypes.
    m_granule = max(8, 32 // isz)

    # Output tile dominates reuse -> keep it large; tk sized in bytes
    # (512 f32 columns worth) just to amortize per-grid-step overhead.
    tm_max, tn_max = 1024, 1024
    tk_max = 512 * max(1, 4 // isz)

    tm = _fit_tile(M, tm_max, m_granule)
    tn = _fit_tile(N, tn_max, 128)
    tk = _fit_tile(K, tk_max, 128)

    # Megacore: make sure the parallel (i, j) grid has >= 2 blocks so both
    # TensorCores on v7x get work (negligible cost on single-TC chips).
    if _cdiv(M, tm) * _cdiv(N, tn) < 2:
        if M >= 2 * m_granule:
            tm = _round_up(_cdiv(M, 2), m_granule)
        elif N >= 2 * 128:
            tn = _round_up(_cdiv(N, 2), 128)

    return tm, tn, tk


def _make_kernels(acc_dtype, precision):
    def direct_kernel(a_ref, b_ref, o_ref):
        # Output dtype == accumulator dtype: accumulate directly into the
        # resident output tile (no scratch, no final copy).
        @pl.when(pl.program_id(2) == 0)
        def _():
            o_ref[...] = jnp.zeros_like(o_ref)

        o_ref[...] += jnp.dot(
            a_ref[...], b_ref[...],
            preferred_element_type=acc_dtype, precision=precision)

    def acc_kernel(a_ref, b_ref, o_ref, acc_ref):
        # Narrow output: wide scratch accumulator, cast on the last K step.
        @pl.when(pl.program_id(2) == 0)
        def _():
            acc_ref[...] = jnp.zeros_like(acc_ref)

        acc_ref[...] += jnp.dot(
            a_ref[...], b_ref[...],
            preferred_element_type=acc_dtype, precision=precision)

        @pl.when(pl.program_id(2) == pl.num_programs(2) - 1)
        def _():
            o_ref[...] = acc_ref[...].astype(o_ref.dtype)

    return direct_kernel, acc_kernel


def pallas_matmul(x1, x2, *, tm=None, tn=None, tk=None, precision=None):
    assert x1.ndim == 2 and x2.ndim == 2, "this wrapper implements 2-D matmul"
    M, K = x1.shape
    K2, N = x2.shape
    assert K == K2, "inner dimensions must match"

    out_dtype = jnp.promote_types(x1.dtype, x2.dtype)
    a = x1.astype(out_dtype)
    b = x2.astype(out_dtype)

    stm, stn, stk = _select_tiles(M, N, K, out_dtype)
    tm = tm or stm
    tn = tn or stn
    tk = tk or stk

    # Zero-pad to tile multiples (skipped when already aligned); zeros along K
    # contribute nothing, padded rows/cols are sliced off below, so the result
    # is exact.
    Mp, Np, Kp = _round_up(M, tm), _round_up(N, tn), _round_up(K, tk)
    if (Mp, Kp) != (M, K):
        a = jnp.pad(a, ((0, Mp - M), (0, Kp - K)))
    if (Kp, Np) != (K, N):
        b = jnp.pad(b, ((0, Kp - K), (0, Np - N)))

    grid = (Mp // tm, Np // tn, Kp // tk)

    isz = jnp.dtype(out_dtype).itemsize

    # Integer inputs accumulate exactly in int32; float inputs in f32.
    # TODO(synk): v7x MXU has no integer datapath; integer matmuls will lower
    # via a slower path there.
    if jnp.issubdtype(out_dtype, jnp.integer):
        acc_dtype = jnp.int32
    else:
        acc_dtype = jnp.float32

    direct_kernel, acc_kernel = _make_kernels(acc_dtype, precision)
    if jnp.dtype(out_dtype) == jnp.dtype(acc_dtype):
        kernel = direct_kernel
        scratch_shapes = []
        acc_bytes = 0
    else:
        kernel = acc_kernel
        scratch_shapes = [pltpu.VMEM((tm, tn), acc_dtype)]
        acc_bytes = tm * tn * jnp.dtype(acc_dtype).itemsize

    # Double-buffered A/B/O tiles + accumulator, with 2x headroom, capped at
    # ~80% of this generation's physical VMEM (v5e/v6e: ~102 MiB, v7x: ~51 MiB).
    vmem_needed = (
        2 * (tm * tk + tk * tn) * isz + 2 * tm * tn * isz + acc_bytes
    )
    vmem_cap = _vmem_capacity_bytes()
    vmem_limit = int(min(max(2 * vmem_needed, 32 << 20), int(0.8 * vmem_cap)))

    # A is re-read once per N-tile, B once per M-tile.
    cost = pl.CostEstimate(
        flops=2 * Mp * Np * Kp,
        transcendentals=0,
        bytes_accessed=(
            Mp * Kp * isz * (Np // tn)
            + Kp * Np * isz * (Mp // tm)
            + Mp * Np * isz
        ),
    )

    out_padded = pl.pallas_call(
        kernel,
        out_shape=jax.ShapeDtypeStruct((Mp, Np), out_dtype),
        grid_spec=pltpu.PrefetchScalarGridSpec(
            num_scalar_prefetch=0,
            grid=grid,
            in_specs=[
                pl.BlockSpec((tm, tk), lambda i, j, k: (i, k)),
                pl.BlockSpec((tk, tn), lambda i, j, k: (k, j)),
            ],
            out_specs=pl.BlockSpec((tm, tn), lambda i, j, k: (i, j)),
            scratch_shapes=scratch_shapes,
        ),
        compiler_params=pltpu.CompilerParams(
            dimension_semantics=("parallel", "parallel", "arbitrary"),
            vmem_limit_bytes=vmem_limit,
        ),
        cost_estimate=cost,
    )(a, b)

    if (Mp, Np) != (M, N):
        out_padded = out_padded[:M, :N]
    return out_padded


if __name__ == "__main__":
    key = jax.random.PRNGKey(0)
    k1, k2, k3, k4 = jax.random.split(key, 4)

    # Case 1: small, tile-aligned shapes (exercises the megacore 2-way split).
    M, K, N = 128, 256, 128
    x1 = jax.random.normal(k1, (M, K), dtype=jnp.float32)
    x2 = jax.random.normal(k2, (K, N), dtype=jnp.float32)
    out = pallas_matmul(x1, x2)
    jax.block_until_ready(out)
    ref = x1 @ x2
    assert out.shape == (M, N)
    assert jnp.allclose(out, ref, atol=1e-4, rtol=1e-4)

    # Case 2: ragged shapes exercising the balanced-tile padding + slicing path.
    M2, K2_, N2 = 200, 300, 160
    y1 = jax.random.normal(k3, (M2, K2_), dtype=jnp.float32)
    y2 = jax.random.normal(k4, (K2_, N2), dtype=jnp.float32)
    out2 = pallas_matmul(y1, y2)
    jax.block_until_ready(out2)
    ref2 = y1 @ y2
    assert out2.shape == (M2, N2)
    assert jnp.allclose(out2, ref2, atol=1e-4, rtol=1e-4)

    print("KERNEL_OK")
</pallas_src>

<mosaic_0001>
module attributes {stable_mosaic.version = 11 : i64} {
  func.func @direct_kernel(%arg0: i32, %arg1: i32, %arg2: i32, %arg3: memref<64x256xf32, #tpu.memory_space<vmem>>, %arg4: memref<256x128xf32, #tpu.memory_space<vmem>>, %arg5: memref<64x128xf32, #tpu.memory_space<vmem>>) attributes {dimension_semantics = [#tpu.dimension_semantics<parallel>, #tpu.dimension_semantics<parallel>, #tpu.dimension_semantics<arbitrary>], iteration_bounds = array<i64: 2, 1, 1>, scalar_prefetch = 0 : i64, scratch_operands = 0 : i64, tpu.core_type = #tpu.core_type<tc>, window_params = [{transform_indices = @transform_0, window_bounds = array<i64: 64, 256>}, {transform_indices = @transform_1, window_bounds = array<i64: 256, 128>}, {transform_indices = @transform_2, window_bounds = array<i64: 64, 128>}]} {
    %c0_i32 = arith.constant 0 : i32
    %0 = arith.cmpi eq, %arg2, %c0_i32 : i32
    %1 = arith.extui %0 : i1 to i32
    %c0_i32_0 = arith.constant 0 : i32
    %2 = arith.cmpi ne, %1, %c0_i32_0 : i32
    scf.if %2 {
      %cst_8 = arith.constant 0.000000e+00 : f32
      %9 = vector.broadcast %cst_8 : f32 to vector<64x128xf32>
      %c0_9 = arith.constant 0 : index
      %c0_10 = arith.constant 0 : index
      %10 = vector.load %arg5[%c0_9, %c0_10] : memref<64x128xf32, #tpu.memory_space<vmem>>, vector<64x128xf32>
      tpu.vector_store %arg5[%c0_9, %c0_10], %9 {strides = array<i32>} : memref<64x128xf32, #tpu.memory_space<vmem>>, vector<64x128xf32>,
    } else {
    }
    %c0 = arith.constant 0 : index
    %c0_1 = arith.constant 0 : index
    %3 = vector.load %arg5[%c0, %c0_1] : memref<64x128xf32, #tpu.memory_space<vmem>>, vector<64x128xf32>
    %c0_2 = arith.constant 0 : index
    %c0_3 = arith.constant 0 : index
    %4 = vector.load %arg3[%c0_2, %c0_3] : memref<64x256xf32, #tpu.memory_space<vmem>>, vector<64x256xf32>
    %c0_4 = arith.constant 0 : index
    %c0_5 = arith.constant 0 : index
    %5 = vector.load %arg4[%c0_4, %c0_5] : memref<256x128xf32, #tpu.memory_space<vmem>>, vector<256x128xf32>
    %cst = arith.constant dense<0.000000e+00> : vector<64x128xf32>
    %6 = tpu.matmul %4, %5, %cst {dimension_numbers = #tpu.dot_dimension_numbers<[1], [0], [0], [1], [0, 0, 1, 1], [], []>} : vector<64x256xf32>, vector<256x128xf32>, vector<64x128xf32> -> vector<64x128xf32>
    %7 = arith.addf %3, %6 : vector<64x128xf32>
    %c0_6 = arith.constant 0 : index
    %c0_7 = arith.constant 0 : index
    %8 = vector.load %arg5[%c0_6, %c0_7] : memref<64x128xf32, #tpu.memory_space<vmem>>, vector<64x128xf32>
    tpu.vector_store %arg5[%c0_6, %c0_7], %7 {strides = array<i32>} : memref<64x128xf32, #tpu.memory_space<vmem>>, vector<64x128xf32>,
    return
  }
  func.func @transform_0(%arg0: i32, %arg1: i32, %arg2: i32) -> (i32, i32) {
    %c0_i32 = arith.constant 0 : i32
    return %arg0, %arg2 : i32, i32
  }
  func.func @transform_1(%arg0: i32, %arg1: i32, %arg2: i32) -> (i32, i32) {
    %c0_i32 = arith.constant 0 : i32
    return %arg2, %arg1 : i32, i32
  }
  func.func @transform_2(%arg0: i32, %arg1: i32, %arg2: i32) -> (i32, i32) {
    %c0_i32 = arith.constant 0 : i32
    return %arg0, %arg1 : i32, i32
  }
}

</mosaic_0001>

<llo_original>
// kernel: tpu_custom_call.1
$region0: #{tpu_custom_call.1}
  #allocation0 [shape = 'u32[]', space=smem, size = 0x4, offset = 0x4, fixed_abs, tag = 'smem constant byte address 0x4 - core index']
  #allocation1 [shape = 'u32[144,128]{1,0:T(1,128)}', space=vmem, size = 0x12000, scoped, tag = 'internal scratch']
  %s0 = inlined_call_operand.hbm [shape: f32[128,256], index: 0, kind: input, shape index: {}]
  %s1 = inlined_call_operand.hbm [shape: f32[256,128], index: 1, kind: input, shape index: {}]
  %s2 = inlined_call_operand.hbm [shape: f32[128,128], index: 2, kind: output, shape index: {}]
  %s3 = sld [smem:[#allocation0]]
  $region53: #{tpu_custom_call.1} parent=0
    _
  %s5 = ssub.s32 1, %s3
  %s6 = scalar_select 0, %s5, %s3
  $region1: #{tpu_custom_call.1} parent=0
    #allocation2 [shape = 'u8[131072]{0}', space=vmem, size = 0x20000, scoped, tag = 'input window, operand 0']
    #allocation3 [shape = 's32[2]{0}', space=sflag, size = 0x8, scoped, tag = 'scoped memory for tpu_custom_call.1']
    #allocation4 [shape = 's32[2]{0}', space=sflag, size = 0x8, scoped, tag = 'scoped memory for tpu_custom_call.1']
    #allocation5 [shape = 'u8[131072]{0}', space=vmem, size = 0x20000, scoped, tag = 'input window, operand 1, single buffered']
    #allocation6 [shape = 's32[1]{0}', space=sflag, size = 0x4, scoped, tag = 'scoped memory for tpu_custom_call.1']
    #allocation7 [shape = 'u8[65536]{0}', space=vmem, size = 0x10000, scoped, tag = 'output window, operand 0']
    %7 = vsyncpa [#allocation3], 0
    %s8 = scalar_lea.sflag [#allocation3], 1
    %9 = vsyncpa %s8, 0
    %10 = vsyncpa [#allocation6], 0
    %11 = vsyncpa [#allocation4], 0
    %s12 = scalar_lea.sflag [#allocation4], 1
    %13 = vsyncpa %s12, 0
    loop: start=0, step=1, limit=4
    $region2: #{tpu_custom_call.1} parent=1 // loop_pre_header
      _
    $region3: #{tpu_custom_call.1} parent=1 // loop_header
      %s15 = sphi 0, %s19
      %p16 = scmp.ge.s32.totalorder %s15, 4
      %s22 = sphi 0, %s41
      %s23 = sphi 0, %s37
      %s24 = sphi 0, %s33
      %s25 = sphi 0, %s22
      %s26 = sphi 0, %s23
      %s27 = sphi 0, %s24
      %s28 = sphi 0, %s25
      %s29 = sphi 0, %s26
      %s30 = sphi 0, %s27
      %s46 = sphi 0, %s48
      %s49 = sphi 0, %s46
      %s50 = sphi 0, %s49
      %s66 = sphi 0, %s50
      %s74 = sphi 0, %s76
      %s77 = sphi 0, %s74
      %s78 = sphi 0, %s77
      %s94 = sphi 0, %s78
      %s102 = sphi 0, %s104
      %s105 = sphi 0, %s102
      %s106 = sphi 0, %s105
      %s122 = sphi 0, %s106
    $region4: #{tpu_custom_call.1} parent=1 // loop_header_branch
      %18 = sbr.rel (%p16) target = $region8
    $region5: #{tpu_custom_call.1} parent=1 // loop_body
      %s20 = ssub.s32 %s15, 1
      %s21 = ssub.s32 %s15, 2
      %s31 = sadd.s32 1, %s24
      %p32 = scmp.ge.s32.totalorder %s31, 1
      %s33 = scalar_select %p32, 0, %s31
      %s34 = sadd.s32 1, %s23
      %s35 = scalar_select %p32, %s34, %s23
      %p36 = scmp.ge.s32.totalorder %s35, 1
      %s37 = scalar_select %p36, 0, %s35
      %s38 = sadd.s32 1, %s22
      %s39 = scalar_select %p36, %s38, %s22
      %p40 = scmp.ge.s32.totalorder %s39, 2
      %s41 = scalar_select %p40, 0, %s39
      %s42 = ssub.s32 %s22, %s41
      %s43 = ssub.s32 %s24, %s33
      %s44 = sor.u32 %s42, %s43
      %p45 = scmp.eq.s32.totalorder %s44, 0
      %s47 = sadd.s32 %s46, 1
      %s48 = scalar_select %p45, %s46, %s47
      %p51 = pneg %p45
      %p52 = scmp.eq.s32.totalorder %s15, 1
      %p53 = por %p51, %p52
      %p54 = scmp.ne.s32.totalorder %s46, %s49
      %p55 = scmp.eq.s32.totalorder %s15, 0
      %p56 = por %p54, %p55
      %p57 = scmp.ne.s32.totalorder %s46, %s49
      %p58 = scmp.eq.s32.totalorder %s20, 1
      %p59 = por %p57, %p58
      %p60 = scmp.ne.s32.totalorder %s49, %s50
      %p61 = scmp.eq.s32.totalorder %s20, 0
      %p62 = por %p60, %p61
      %p63 = scmp.ne.s32.totalorder %s49, %s50
      %p64 = scmp.eq.s32.totalorder %s21, 1
      %p65 = por %p63, %p64
      %p67 = scmp.ne.s32.totalorder %s50, %s66
      %p68 = scmp.eq.s32.totalorder %s21, 0
      %p69 = por %p67, %p68
      %s70 = ssub.s32 %s24, %s33
      %s71 = ssub.s32 %s23, %s37
      %s72 = sor.u32 %s70, %s71
      %p73 = scmp.eq.s32.totalorder %s72, 0
      %s75 = sadd.s32 %s74, 1
      %s76 = scalar_select %p73, %s74, %s75
      %p79 = pneg %p73
      %p80 = scmp.eq.s32.totalorder %s15, 1
      %p81 = por %p79, %p80
      %p82 = scmp.ne.s32.totalorder %s74, %s77
      %p83 = scmp.eq.s32.totalorder %s15, 0
      %p84 = por %p82, %p83
      %p85 = scmp.ne.s32.totalorder %s74, %s77
      %p86 = scmp.eq.s32.totalorder %s20, 1
      %p87 = por %p85, %p86
      %p88 = scmp.ne.s32.totalorder %s77, %s78
      %p89 = scmp.eq.s32.totalorder %s20, 0
      %p90 = por %p88, %p89
      %p91 = scmp.ne.s32.totalorder %s77, %s78
      %p92 = scmp.eq.s32.totalorder %s21, 1
      %p93 = por %p91, %p92
      %p95 = scmp.ne.s32.totalorder %s78, %s94
      %p96 = scmp.eq.s32.totalorder %s21, 0
      %p97 = por %p95, %p96
      %s98 = ssub.s32 %s22, %s41
      %s99 = ssub.s32 %s23, %s37
      %s100 = sor.u32 %s98, %s99
      %p101 = scmp.eq.s32.totalorder %s100, 0
      %s103 = sadd.s32 %s102, 1
      %s104 = scalar_select %p101, %s102, %s103
      %p107 = pneg %p101
      %p108 = scmp.eq.s32.totalorder %s15, 1
      %p109 = por %p107, %p108
      %p110 = scmp.ne.s32.totalorder %s102, %s105
      %p111 = scmp.eq.s32.totalorder %s15, 0
      %p112 = por %p110, %p111
      %p113 = scmp.ne.s32.totalorder %s102, %s105
      %p114 = scmp.eq.s32.totalorder %s20, 1
      %p115 = por %p113, %p114
      %p116 = scmp.ne.s32.totalorder %s105, %s106
      %p117 = scmp.eq.s32.totalorder %s20, 0
      %p118 = por %p116, %p117
      %p119 = scmp.ne.s32.totalorder %s105, %s106
      %p120 = scmp.eq.s32.totalorder %s21, 1
      %p121 = por %p119, %p120
      %p123 = scmp.ne.s32.totalorder %s106, %s122
      %p124 = scmp.eq.s32.totalorder %s21, 0
      %p125 = por %p123, %p124
      %p126 = scmp.le.s32.totalorder 1, %s15
      %p127 = scmp.lt.s32.totalorder %s15, 3
      %p128 = pnand %p126, %p127
      %p129 = pneg %p128
      // Predicated region
      $region9: #{tpu_custom_call.1} parent=5 // pred_check
        _
      $region10: #{tpu_custom_call.1} parent=5 // pred_check_branch
        %131 = sbr.rel (%p128) target = $region12
      $region11: #{tpu_custom_call.1} parent=5 // pred_region
        %s132 = ssub.s32 %s15, 1
        // Predicated region
        $region13: #{tpu_custom_call.1} parent=11 // pred_check
          %p133 = pneg %p90
        $region14: #{tpu_custom_call.1} parent=11 // pred_check_branch
          %135 = sbr.rel (%p133) target = $region16
        $region15: #{tpu_custom_call.1} parent=11 // pred_region
          %s136 = smul.u32 32, %s27
          %s138 = ssub.s32 4096, 4096
          %139 = vsyncadd [#allocation6], %s138
          %s140 = sadd.s32 %s26, %s136
          %s141 = smul.addr %s140, 128
          %s142 = scalar_lea.hbm %s1, %s141
          %s143 = sshll.u32 [#allocation5], 4
          %s144 = int_to_ptr.vmem [resolvable:$true] %s143
          %149 = dma.hbm_to_vmem [thread:$0]  %s142, 4096, %s144, [#allocation6], 128, 128, 8
        $region16: #{tpu_custom_call.1} parent=11 // pred_fallthru
          _
      $region12: #{tpu_custom_call.1} parent=5 // pred_fallthru
        _
      %p150 = scmp.lt.s32.totalorder %s15, 2
      // Predicated region
      $region17: #{tpu_custom_call.1} parent=5 // pred_check
        %p151 = pneg %p150
      $region18: #{tpu_custom_call.1} parent=5 // pred_check_branch
        %153 = sbr.rel (%p151) target = $region20
      $region19: #{tpu_custom_call.1} parent=5 // pred_region
        // Predicated region
        $region21: #{tpu_custom_call.1} parent=19 // pred_check
          %p154 = pneg %p56
        $region22: #{tpu_custom_call.1} parent=19 // pred_check_branch
          %156 = sbr.rel (%p154) target = $region24
        $region23: #{tpu_custom_call.1} parent=19 // pred_region
          %s157 = sand.u32 %s46, 1
          %s158 = scalar_lea.sflag [#allocation3], %s157
          %s159 = sand.u32 %s46, 1
          %s160 = smul.addr %s159, 128
          %s161 = scalar_lea.vmem [#allocation2], %s160
          %s162 = smul.u32 8, %s22
          %s163 = smul.u32 2, %s24
          %s165 = ssub.s32 2048, 2048
          %166 = vsyncadd %s158, %s165
          %s167 = smul.addr %s162, 2
          %s168 = sadd.s32 %s163, %s167
          %s169 = smul.addr %s168, 128
          %s170 = scalar_lea.hbm %s0, %s169
          %s171 = sshll.u32 %s161, 4
          %s172 = int_to_ptr.vmem [resolvable:$true] %s171
          %177 = dma.hbm_to_vmem [thread:$0]  %s170, 2048, %s172, %s158, 256, 256, 16
        $region24: #{tpu_custom_call.1} parent=19 // pred_fallthru
          _
      $region20: #{tpu_custom_call.1} parent=5 // pred_fallthru
        _
      %p178 = scmp.le.s32.totalorder 1, %s15
      %p179 = scmp.lt.s32.totalorder %s15, 3
      %p180 = pnand %p178, %p179
      %p181 = pneg %p180
      // Predicated region
      $region25: #{tpu_custom_call.1} parent=5 // pred_check
        _
      $region26: #{tpu_custom_call.1} parent=5 // pred_check_branch
        %183 = sbr.rel (%p180) target = $region28
      $region27: #{tpu_custom_call.1} parent=5 // pred_region
        %s184 = ssub.s32 %s15, 1
        %s185 = sand.u32 %s49, 1
        %s186 = scalar_lea.sflag [#allocation3], %s185
        %s187 = sand.u32 %s49, 1
        %s188 = smul.addr %s187, 128
        %s189 = scalar_lea.vmem [#allocation2], %s188
        // Predicated region
        $region29: #{tpu_custom_call.1} parent=27 // pred_check
          %p190 = pneg %p62
        $region30: #{tpu_custom_call.1} parent=27 // pred_check_branch
          %192 = sbr.rel (%p190) target = $region32
        $region31: #{tpu_custom_call.1} parent=27 // pred_region
          %193 = dma.done %s186, 2048
        $region32: #{tpu_custom_call.1} parent=27 // pred_fallthru
          _
        // Predicated region
        $region33: #{tpu_custom_call.1} parent=27 // pred_check
          %p194 = pneg %p90
        $region34: #{tpu_custom_call.1} parent=27 // pred_check_branch
          %196 = sbr.rel (%p194) target = $region36
        $region35: #{tpu_custom_call.1} parent=27 // pred_region
          %197 = dma.done [#allocation6], 4096
        $region36: #{tpu_custom_call.1} parent=27 // pred_fallthru
          _
        %s198 = sand.u32 %s49, 1
        %s199 = scalar_lea.sflag [#allocation3], %s198
        %s200 = sand.u32 %s49, 1
        %s201 = smul.addr %s200, 128
        %s202 = scalar_lea.vmem [#allocation2], %s201
        %p203 = pneg %p62
        %p204 = pneg %p59
        %p205 = pneg %p90
        %p206 = pneg %p87
        %p207 = pneg %p118
        %p208 = pneg %p115
        %s209 = sand.u32 %s105, 1
        %s210 = scalar_lea.sflag [#allocation4], %s209
        %s211 = sand.u32 %s105, 1
        %s212 = smul.addr %s211, 64
        %s213 = scalar_lea.vmem [#allocation7], %s212
        %s214 = smul.u32 8, %s25
        %s215 = smul.u32 2, %s27
        %s216 = smul.u32 32, %s27
        %s217 = smul.u32 8, %s25
        %p218 = scmp.eq.s32.totalorder %s27, 0
        // Predicated region
        $region37: #{tpu_custom_call.1} parent=27 // pred_check
          %p219 = pneg %p218
        $region38: #{tpu_custom_call.1} parent=27 // pred_check_branch
          %221 = sbr.rel (%p219) target = $region40
        $region39: #{tpu_custom_call.1} parent=27 // pred_region
          %222 = vst [vmem:[%s213] sm:$0xff] 0.0
          %223 = vst [vmem:[%s213 + $0x8] sm:$0xff] 0.0
          %224 = vst [vmem:[%s213 + $0x10] sm:$0xff] 0.0
          %225 = vst [vmem:[%s213 + $0x18] sm:$0xff] 0.0
          %226 = vst [vmem:[%s213 + $0x20] sm:$0xff] 0.0
          %227 = vst [vmem:[%s213 + $0x28] sm:$0xff] 0.0
          %228 = vst [vmem:[%s213 + $0x30] sm:$0xff] 0.0
          %229 = vst [vmem:[%s213 + $0x38] sm:$0xff] 0.0
        $region40: #{tpu_custom_call.1} parent=27 // pred_fallthru
          _
        %v230 = vld [vmem:[%s213] sm:$0xff]
        %v231 = vld [vmem:[%s213 + $0x8] sm:$0xff]
        %v232 = vld [vmem:[%s213 + $0x10] sm:$0xff]
        %v233 = vld [vmem:[%s213 + $0x18] sm:$0xff]
        %v234 = vld [vmem:[%s213 + $0x20] sm:$0xff]
        %v235 = vld [vmem:[%s213 + $0x28] sm:$0xff]
        %v236 = vld [vmem:[%s213 + $0x30] sm:$0xff]
        %v237 = vld [vmem:[%s213 + $0x38] sm:$0xff]
        %v238 = vld [vmem:[%s189] sm:$0xff]
        %v239 = vld [vmem:[%s189 + $0x8] sm:$0xff]
        %v240 = vld [vmem:[%s189 + $0x10] sm:$0xff]
        %v241 = vld [vmem:[%s189 + $0x18] sm:$0xff]
        %v242 = vld [vmem:[%s189 + $0x20] sm:$0xff]
        %v243 = vld [vmem:[%s189 + $0x28] sm:$0xff]
        %v244 = vld [vmem:[%s189 + $0x30] sm:$0xff]
        %v245 = vld [vmem:[%s189 + $0x38] sm:$0xff]
        %v246 = vld [vmem:[%s189 + $0x40] sm:$0xff]
        %v247 = vld [vmem:[%s189 + $0x48] sm:$0xff]
        %v248 = vld [vmem:[%s189 + $0x50] sm:$0xff]
        %v249 = vld [vmem:[%s189 + $0x58] sm:$0xff]
        %v250 = vld [vmem:[%s189 + $0x60] sm:$0xff]
        %v251 = vld [vmem:[%s189 + $0x68] sm:$0xff]
        %v252 = vld [vmem:[%s189 + $0x70] sm:$0xff]
        %v253 = vld [vmem:[%s189 + $0x78] sm:$0xff]
        %v254 = vld [vmem:[#allocation5] sm:$0xff]
        %v255 = vld [vmem:[#allocation5 + $0x8] sm:$0xff]
        %v256 = vld [vmem:[#allocation5 + $0x10] sm:$0xff]
        %v257 = vld [vmem:[#allocation5 + $0x18] sm:$0xff]
        %v258 = vld [vmem:[#allocation5 + $0x20] sm:$0xff]
        %v259 = vld [vmem:[#allocation5 + $0x28] sm:$0xff]
        %v260 = vld [vmem:[#allocation5 + $0x30] sm:$0xff]
        %v261 = vld [vmem:[#allocation5 + $0x38] sm:$0xff]
        %v262 = vld [vmem:[#allocation5 + $0x40] sm:$0xff]
        %v263 = vld [vmem:[#allocation5 + $0x48] sm:$0xff]
        %v264 = vld [vmem:[#allocation5 + $0x50] sm:$0xff]
        %v265 = vld [vmem:[#allocation5 + $0x58] sm:$0xff]
        %v266 = vld [vmem:[#allocation5 + $0x60] sm:$0xff]
        %v267 = vld [vmem:[#allocation5 + $0x68] sm:$0xff]
        %v268 = vld [vmem:[#allocation5 + $0x70] sm:$0xff]
        %v269 = vld [vmem:[#allocation5 + $0x78] sm:$0xff]
        %v270 = vld [vmem:[#allocation5 + $0x80] sm:$0xff]
        %v271 = vld [vmem:[#allocation5 + $0x88] sm:$0xff]
        %v272 = vld [vmem:[#allocation5 + $0x90] sm:$0xff]
        %v273 = vld [vmem:[#allocation5 + $0x98] sm:$0xff]
        %v274 = vld [vmem:[#allocation5 + $0xa0] sm:$0xff]
        %v275 = vld [vmem:[#allocation5 + $0xa8] sm:$0xff]
        %v276 = vld [vmem:[#allocation5 + $0xb0] sm:$0xff]
        %v277 = vld [vmem:[#allocation5 + $0xb8] sm:$0xff]
        %v278 = vld [vmem:[#allocation5 + $0xc0] sm:$0xff]
        %v279 = vld [vmem:[#allocation5 + $0xc8] sm:$0xff]
        %v280 = vld [vmem:[#allocation5 + $0xd0] sm:$0xff]
        %v281 = vld [vmem:[#allocation5 + $0xd8] sm:$0xff]
        %v282 = vld [vmem:[#allocation5 + $0xe0] sm:$0xff]
        %v283 = vld [vmem:[#allocation5 + $0xe8] sm:$0xff]
        %v284 = vld [vmem:[#allocation5 + $0xf0] sm:$0xff]
        %v285 = vld [vmem:[#allocation5 + $0xf8] sm:$0xff]
        %286 = vmatprep.subr.mxu0 0.0
        %287 = vmatpush1.msra.mxu0 %v254
        %288 = vmatprep.subr.mxu0 0.0
        %289 = vmatpush1.msra.mxu0 %v255
        %290 = vmatprep.subr.mxu0 0.0
        %291 = vmatpush1.msra.mxu0 %v256
        %292 = vmatprep.subr.mxu0 0.0
        %293 = vmatpush1.msra.mxu0 %v257
        %294 = vmatprep.subr.mxu0 0.0
        %295 = vmatpush1.msra.mxu0 %v258
        %296 = vmatprep.subr.mxu0 0.0
        %297 = vmatpush1.msra.mxu0 %v259
        %298 = vmatprep.subr.mxu0 0.0
        %299 = vmatpush1.msra.mxu0 %v260
        %300 = vmatprep.subr.mxu0 0.0
        %301 = vmatpush1.msra.mxu0 %v261
        %302 = vmatprep.subr.mxu0 0.0
        %303 = vmatpush1.msra.mxu0 %v262
        %304 = vmatprep.subr.mxu0 0.0
        %305 = vmatpush1.msra.mxu0 %v263
        %306 = vmatprep.subr.mxu0 0.0
        %307 = vmatpush1.msra.mxu0 %v264
        %308 = vmatprep.subr.mxu0 0.0
        %309 = vmatpush1.msra.mxu0 %v265
        %310 = vmatprep.subr.mxu0 0.0
        %311 = vmatpush1.msra.mxu0 %v266
        %312 = vmatprep.subr.mxu0 0.0
        %313 = vmatpush1.msra.mxu0 %v267
        %314 = vmatprep.subr.mxu0 0.0
        %315 = vmatpush1.msra.mxu0 %v268
        %316 = vmatprep.subr.mxu0 0.0
        %317 = vmatpush1.msra.mxu0 %v269
        %318 = vmatprep.subr.mxu0 0.0
        %319 = vmatpush1.msra.mxu0 %v270
        %320 = vmatprep.subr.mxu0 0.0
        %321 = vmatpush1.msra.mxu0 %v271
        %322 = vmatprep.subr.mxu0 0.0
        %323 = vmatpush1.msra.mxu0 %v272
        %324 = vmatprep.subr.mxu0 0.0
        %325 = vmatpush1.msra.mxu0 %v273
        %326 = vmatprep.subr.mxu0 0.0
        %327 = vmatpush1.msra.mxu0 %v274
        %328 = vmatprep.subr.mxu0 0.0
        %329 = vmatpush1.msra.mxu0 %v275
        %330 = vmatprep.subr.mxu0 0.0
        %331 = vmatpush1.msra.mxu0 %v276
        %332 = vmatprep.subr.mxu0 0.0
        %333 = vmatpush1.msra.mxu0 %v277
        %334 = vmatprep.subr.mxu0 0.0
        %335 = vmatpush1.msra.mxu0 %v278
        %336 = vmatprep.subr.mxu0 0.0
        %337 = vmatpush1.msra.mxu0 %v279
        %338 = vmatprep.subr.mxu0 0.0
        %339 = vmatpush1.msra.mxu0 %v280
        %340 = vmatprep.subr.mxu0 0.0
        %341 = vmatpush1.msra.mxu0 %v281
        %342 = vmatprep.subr.mxu0 0.0
        %343 = vmatpush1.msra.mxu0 %v282
        %344 = vmatprep.subr.mxu0 0.0
        %345 = vmatpush1.msra.mxu0 %v283
        %346 = vmatprep.subr.mxu0 0.0
        %347 = vmatpush1.msra.mxu0 %v284
        %348 = vmatprep.subr.mxu0 0.0
        %349 = vmatpush1.msra.mxu0 %v285
        %350 = vmatprep.mubr.f32.mxu0 %v239
        %351 = vmatmul.mubr.f32.gmra.mrb[0].mxu0 %v238
        %v352 = vpop.f32.mrb[0].mxu0
        %v353 = vadd.f32 0.0, %v352
        %v354 = vpop.f32.mrb[0].mxu0
        %355 = vmatprep.mubr.f32.mxu0 %v241
        %356 = vmatmul.mubr.f32.gmra.mrb[0].mxu0 %v240
        %v357 = vpop.f32.mrb[0].mxu0
        %v358 = vadd.f32 0.0, %v357
        %v359 = vpop.f32.mrb[0].mxu0
        %360 = vmatprep.mubr.f32.mxu0 %v243
        %361 = vmatmul.mubr.f32.gmra.mrb[0].mxu0 %v242
        %v362 = vpop.f32.mrb[0].mxu0
        %v363 = vadd.f32 0.0, %v362
        %v364 = vpop.f32.mrb[0].mxu0
        %365 = vmatprep.mubr.f32.mxu0 %v245
        %366 = vmatmul.mubr.f32.gmra.mrb[0].mxu0 %v244
        %v367 = vpop.f32.mrb[0].mxu0
        %v368 = vadd.f32 0.0, %v367
        %v369 = vpop.f32.mrb[0].mxu0
        %370 = vmatprep.mubr.f32.mxu0 %v247
        %371 = vmatmul.mubr.f32.gmra.mrb[0].mxu0 %v246
        %v372 = vpop.f32.mrb[0].mxu0
        %v373 = vadd.f32 0.0, %v372
        %v374 = vpop.f32.mrb[0].mxu0
        %375 = vmatprep.mubr.f32.mxu0 %v249
        %376 = vmatmul.mubr.f32.gmra.mrb[0].mxu0 %v248
        %v377 = vpop.f32.mrb[0].mxu0
        %v378 = vadd.f32 0.0, %v377
        %v379 = vpop.f32.mrb[0].mxu0
        %380 = vmatprep.mubr.f32.mxu0 %v251
        %381 = vmatmul.mubr.f32.gmra.mrb[0].mxu0 %v250
        %v382 = vpop.f32.mrb[0].mxu0
        %v383 = vadd.f32 0.0, %v382
        %v384 = vpop.f32.mrb[0].mxu0
        %385 = vmatprep.mubr.f32.mxu0 %v253
        %386 = vmatmul.mubr.f32.gmra.mrb[0].mxu0 %v252
        %v387 = vpop.f32.mrb[0].mxu0
        %v388 = vadd.f32 0.0, %v387
        %v389 = vpop.f32.mrb[0].mxu0
        %390 = vdwg.mxu0
        %v391 = vadd.f32 %v230, %v353
        %v392 = vadd.f32 %v231, %v358
        %v393 = vadd.f32 %v232, %v363
        %v394 = vadd.f32 %v233, %v368
        %v395 = vadd.f32 %v234, %v373
        %v396 = vadd.f32 %v235, %v378
        %v397 = vadd.f32 %v236, %v383
        %v398 = vadd.f32 %v237, %v388
        %399 = vst [vmem:[%s213] sm:$0xff] %v391
        %400 = vst [vmem:[%s213 + $0x8] sm:$0xff] %v392
        %401 = vst [vmem:[%s213 + $0x10] sm:$0xff] %v393
        %402 = vst [vmem:[%s213 + $0x18] sm:$0xff] %v394
        %403 = vst [vmem:[%s213 + $0x20] sm:$0xff] %v395
        %404 = vst [vmem:[%s213 + $0x28] sm:$0xff] %v396
        %405 = vst [vmem:[%s213 + $0x30] sm:$0xff] %v397
        %406 = vst [vmem:[%s213 + $0x38] sm:$0xff] %v398
        %s407 = sand.u32 %s105, 1
        %s408 = scalar_lea.sflag [#allocation4], %s407
        %s409 = sand.u32 %s105, 1
        %s410 = smul.addr %s409, 64
        %s411 = scalar_lea.vmem [#allocation7], %s410
        // Predicated region
        $region41: #{tpu_custom_call.1} parent=27 // pred_check
          %p412 = pneg %p115
        $region42: #{tpu_custom_call.1} parent=27 // pred_check_branch
          %414 = sbr.rel (%p412) target = $region44
        $region43: #{tpu_custom_call.1} parent=27 // pred_region
          %s415 = smul.u32 8, %s25
          %s417 = ssub.s32 1024, 1024
          %418 = vsyncadd %s408, %s417
          %s419 = sadd.s32 %s26, %s415
          %s420 = smul.addr %s419, 128
          %s421 = scalar_lea.hbm %s2, %s420
          %s422 = sshll.u32 %s411, 4
          %s423 = int_to_ptr.vmem [resolvable:$true] %s422
          %428 = dma.vmem_to_hbm [thread:$0]  %s423, 1024, %s421, %s408, 128, 128, 8
        $region44: #{tpu_custom_call.1} parent=27 // pred_fallthru
          _
      $region28: #{tpu_custom_call.1} parent=5 // pred_fallthru
        _
      %p429 = scmp.le.s32.totalorder 2, %s15
      // Predicated region
      $region45: #{tpu_custom_call.1} parent=5 // pred_check
        %p430 = pneg %p429
      $region46: #{tpu_custom_call.1} parent=5 // pred_check_branch
        %432 = sbr.rel (%p430) target = $region48
      $region47: #{tpu_custom_call.1} parent=5 // pred_region
        %s433 = ssub.s32 %s15, 2
        // Predicated region
        $region49: #{tpu_custom_call.1} parent=47 // pred_check
          %p434 = pneg %p121
        $region50: #{tpu_custom_call.1} parent=47 // pred_check_branch
          %436 = sbr.rel (%p434) target = $region52
        $region51: #{tpu_custom_call.1} parent=47 // pred_region
          %s437 = sand.u32 %s106, 1
          %s438 = scalar_lea.sflag [#allocation4], %s437
          %s439 = sand.u32 %s106, 1
          %s440 = smul.addr %s439, 64
          %s441 = scalar_lea.vmem [#allocation7], %s440
          %442 = dma.done %s438, 1024
        $region52: #{tpu_custom_call.1} parent=47 // pred_fallthru
          _
      $region48: #{tpu_custom_call.1} parent=5 // pred_fallthru
        _
    $region6: #{tpu_custom_call.1} parent=1 // loop_footer
      %s19 = sadd.s32 1, %s15
    $region7: #{tpu_custom_call.1} parent=1 // loop_footer_branch
      %14 = sbr.rel target = $region3
    $region8: #{tpu_custom_call.1} parent=1 // loop_exit
      _
    %443 = vsyncpa [#allocation3], 1
    %s444 = scalar_lea.sflag [#allocation3], 1
    %445 = vsyncpa %s444, 1
    %446 = vsyncpa [#allocation6], 1
    %447 = vsyncpa [#allocation4], 1
    %s448 = scalar_lea.sflag [#allocation4], 1
    %449 = vsyncpa %s448, 1

</llo_original>
